<compile_context>
chip_gen: v6e
topology: v6e:2x2x1
jax: 0.10.0
libtpu: 0.0.40
codegen_flags: <defaults>
</compile_context>

<pallas_src>
import functools

import jax
import jax.numpy as jnp
from jax.experimental import pallas as pl
from jax.experimental.pallas import tpu as pltpu

_MIB = 1024 * 1024


def _round_up(x, m):
    return ((x + m - 1) // m) * m


def _vmem_capacity_bytes():
    """Per-TensorCore VMEM capacity; conservative 64 MiB fallback (v7x)."""
    try:
        return int(pltpu.get_tpu_info().vmem_capacity_bytes)
    except Exception:  # pragma: no cover - hardware-query failure
        return 64 * _MIB


def _default_tiles(vmem_cap_bytes):
    """(block_m, block_i) defaults per generation, keyed off VMEM capacity."""
    if vmem_cap_bytes >= 100 * _MIB:   # v5e / v6e: 128 MiB VMEM per TensorCore
        return 768, 1024
    return 512, 512                    # v7x: 64 MiB VMEM per TensorCore


def _effective_block_i(intermediate_size, block_i):
    """Largest divisor of I that is a multiple of 128 and <= block_i.

    Falls back to full I only when no such divisor exists (tiny / odd I), so a
    user-chosen non-divisor block_i can never silently blow up the weight tile.
    """
    if block_i >= intermediate_size:
        return intermediate_size
    d = (block_i // 128) * 128
    while d >= 128:
        if intermediate_size % d == 0:
            return d
        d -= 128
    return intermediate_size


def _effective_block_m(m, block_m):
    """M-tile: balanced across tiles, rounded to 128 rows (full MXU width)."""
    block_m = max(int(block_m), 1)
    num_tiles = -(-m // block_m)
    per_tile = -(-m // num_tiles)
    return min(_round_up(per_tile, 128), _round_up(block_m, 128))


def _vmem_need_bytes(tm, d, ti, act_sz, w_sz, out_sz):
    """VMEM footprint estimate, including the f32 matmul intermediates."""
    w_tiles = 2 * (d * 2 * ti + ti * d) * w_sz        # double-buffered wgu + wd
    xo_tiles = 2 * tm * d * (act_sz + out_sz)          # double-buffered x + out
    acc = tm * d * 4                                    # f32 accumulator scratch
    inter = tm * 2 * ti * 4 + tm * ti * (4 + act_sz)    # gu (f32) + h (f32 + cast)
    return w_tiles + xo_tiles + acc + inter


def prepare_vision_expert_mlp_weights(w_gate, w_up, w_down, block_i=None,
                                      dtype=None):
    """One-time weight preparation.  Call ONCE, outside the per-step path.

    w_gate, w_up : (I, D)  nn.Linear (out, in) layout
    w_down       : (D, I)
    block_i      : requested I-tile size (auto per generation if None)
    dtype        : compute dtype for the weights (e.g. jnp.bfloat16); None keeps
                   the incoming dtype.  Activations are cast to this dtype at
                   the kernel boundary, so pass bf16 for full MXU throughput.

    Returns (wgu, wd_t, ti):
      wgu  : (D, 2*I) gate/up weights transposed, interleaved per I-tile of
             size ti: block i holds [gate_tile_i | up_tile_i]
      wd_t : (I, D)   down_proj weight transposed
      ti   : the I-tile size baked into wgu's layout (reused by the kernel)
    """
    intermediate, d = w_gate.shape
    if block_i is None:
        _, block_i = _default_tiles(_vmem_capacity_bytes())
    ti = _effective_block_i(intermediate, block_i)
    ng = intermediate // ti

    if dtype is not None:
        w_gate = w_gate.astype(dtype)
        w_up = w_up.astype(dtype)
        w_down = w_down.astype(dtype)

    wg_t = w_gate.T  # (D, I)
    wu_t = w_up.T    # (D, I)
    wgu = jnp.concatenate(
        [wg_t.reshape(d, ng, ti), wu_t.reshape(d, ng, ti)], axis=2
    ).reshape(d, 2 * intermediate)
    wd_t = w_down.T  # (I, D)
    return wgu, wd_t, ti


def _mlp_kernel(x_ref, wgu_ref, wd_ref, o_ref, acc_ref):
    """One (M-tile, I-tile) step of the SwiGLU MLP.

    x_ref   : (tm, D)       activations (compute dtype)
    wgu_ref : (D, 2*ti)     fused [gate | up] weight tile
    wd_ref  : (ti, D)       down_proj weight tile
    o_ref   : (tm, D)       output (written on last I tile)
    acc_ref : (tm, D) f32   VMEM accumulator, resident across the I axis
    """
    i_idx = pl.program_id(1)

    @pl.when(i_idx == 0)
    def _init():
        acc_ref[...] = jnp.zeros_like(acc_ref)

    x = x_ref[...]
    # Fused gate+up projection: one lane-dense MXU matmul, f32 accumulation.
    gu = jnp.dot(x, wgu_ref[...], preferred_element_type=jnp.float32)  # (tm, 2*ti)
    ti = gu.shape[-1] // 2
    gate = gu[:, :ti]
    up = gu[:, ti:]
    h = (gate * jax.nn.sigmoid(gate)) * up  # silu(gate) * up, in f32

    # Partial down projection, accumulated over I tiles in f32.
    # (h is rounded to the compute dtype before the MXU -- standard bf16 path.)
    acc_ref[...] += jnp.dot(h.astype(x.dtype), wd_ref[...],
                            preferred_element_type=jnp.float32)

    @pl.when(i_idx == pl.num_programs(1) - 1)
    def _finalize():
        o_ref[...] = acc_ref[...].astype(o_ref.dtype)


@functools.partial(jax.jit,
                   static_argnames=("tm", "ti", "vmem_limit", "out_dtype"))
def _vision_expert_mlp_2d(x2d, wgu, wd_t, *, tm, ti, vmem_limit, out_dtype):
    m, d = x2d.shape
    intermediate = wd_t.shape[0]
    assert intermediate % ti == 0

    m_pad = _round_up(m, tm)
    if m_pad != m:
        # Only the ragged tail is padded; no copy when M is already aligned.
        x2d = jnp.pad(x2d, ((0, m_pad - m), (0, 0)))

    num_m = m_pad // tm
    num_i = intermediate // ti
    act_sz = jnp.dtype(x2d.dtype).itemsize
    w_sz = jnp.dtype(wgu.dtype).itemsize

    # Advisory cost estimate for XLA's scheduler.
    cost = pl.CostEstimate(
        flops=6 * m_pad * d * intermediate,
        transcendentals=m_pad * intermediate,  # one sigmoid per intermediate elem
        bytes_accessed=(3 * d * intermediate * w_sz * num_m
                        + 2 * m_pad * d * act_sz),
    )

    out2d = pl.pallas_call(
        _mlp_kernel,
        out_shape=jax.ShapeDtypeStruct((m_pad, d), out_dtype),
        grid_spec=pltpu.PrefetchScalarGridSpec(
            num_scalar_prefetch=0,
            grid=(num_m, num_i),
            in_specs=[
                pl.BlockSpec((tm, d), lambda mi, ii: (mi, 0)),        # x tile
                pl.BlockSpec((d, 2 * ti), lambda mi, ii: (0, ii)),    # [gate|up]
                pl.BlockSpec((ti, d), lambda mi, ii: (ii, 0)),        # down tile
            ],
            out_specs=pl.BlockSpec((tm, d), lambda mi, ii: (mi, 0)),
            scratch_shapes=[pltpu.VMEM((tm, d), jnp.float32)],
        ),
        compiler_params=pltpu.CompilerParams(
            dimension_semantics=("parallel", "arbitrary"),
            vmem_limit_bytes=vmem_limit,
        ),
        cost_estimate=cost,
    )(x2d, wgu, wd_t)

    if m_pad != m:
        out2d = out2d[:m]
    return out2d


def vision_expert_mlp(hidden_states, token_type_ids, prepared_weights,
                      block_m=None):
    """hidden_states: (B, L, D); token_type_ids: (B, L) -- unused (matches torch).

    prepared_weights: output of prepare_vision_expert_mlp_weights(...).
    block_m: M-tile override; default is picked per chip generation.
    """
    del token_type_ids  # unused, exactly as in the PyTorch VisionExpertMLP.forward
    wgu, wd_t, ti = prepared_weights
    b, l, d = hidden_states.shape
    intermediate = wd_t.shape[0]
    assert wgu.shape == (d, 2 * intermediate)
    assert wd_t.shape == (intermediate, d)
    assert intermediate % ti == 0

    m = b * l
    x2d = hidden_states.reshape(m, d)

    # Cheap per-call cast of the activations (M*D elements) to the compute
    # dtype fixed at prepare time; the much larger weights are never cast here.
    compute_dtype = wgu.dtype
    if x2d.dtype != compute_dtype:
        x2d = x2d.astype(compute_dtype)

    vmem_cap = _vmem_capacity_bytes()
    if block_m is None:
        block_m, _ = _default_tiles(vmem_cap)
    tm = _effective_block_m(m, block_m)

    act_sz = jnp.dtype(compute_dtype).itemsize
    w_sz = jnp.dtype(wgu.dtype).itemsize
    out_sz = jnp.dtype(hidden_states.dtype).itemsize
    budget = int(0.9 * vmem_cap)
    # Shrink tm (the only layout-free knob; ti is baked into wgu) until the
    # estimate -- including f32 matmul intermediates -- fits the budget.
    while tm > 128 and _vmem_need_bytes(tm, d, ti, act_sz, w_sz, out_sz) > budget:
        tm = max(128, _round_up(tm // 2, 128))
    vmem_need = _vmem_need_bytes(tm, d, ti, act_sz, w_sz, out_sz)
    vmem_limit = int(min(max(vmem_need * 5 // 4, 32 * _MIB), budget))

    out2d = _vision_expert_mlp_2d(x2d, wgu, wd_t, tm=tm, ti=ti,
                                  vmem_limit=vmem_limit,
                                  out_dtype=hidden_states.dtype)
    return out2d.reshape(b, l, d)


def _silu(x):
    return x * jax.nn.sigmoid(x)


def _reference(hidden_states, w_gate, w_up, w_down):
    g = hidden_states @ w_gate.T
    u = hidden_states @ w_up.T
    return (_silu(g) * u) @ w_down.T


if __name__ == "__main__":
    # Small shapes consistent with the module: (B, L, D) activations.
    # L chosen so B*L is NOT tile-aligned (exercises the padded-M path);
    # block_i chosen so the I grid axis has >1 tile (exercises the accumulator).
    B, L, D, I = 2, 15, 128, 256

    key = jax.random.PRNGKey(0)
    k_x, k_g, k_u, k_d = jax.random.split(key, 4)

    hidden_states = jax.random.normal(k_x, (B, L, D), dtype=jnp.float32)
    token_type_ids = jnp.zeros((B, L), dtype=jnp.int32)

    # nn.Linear weight shapes: (out, in).
    w_gate = jax.random.normal(k_g, (I, D), dtype=jnp.float32) * 0.05
    w_up = jax.random.normal(k_u, (I, D), dtype=jnp.float32) * 0.05
    w_down = jax.random.normal(k_d, (D, I), dtype=jnp.float32) * 0.05

    ref = _reference(hidden_states, w_gate, w_up, w_down)

    # --- f32 compute path (tight tolerance) ---
    prep_f32 = prepare_vision_expert_mlp_weights(w_gate, w_up, w_down, block_i=128)
    out_f32 = vision_expert_mlp(hidden_states, token_type_ids, prep_f32, block_m=16)
    out_f32 = jax.block_until_ready(out_f32)
    assert out_f32.shape == (B, L, D)
    assert jnp.allclose(out_f32, ref, atol=1e-4, rtol=1e-4), "f32 mismatch vs reference"

    # --- bf16 compute path (weights cast once at prepare time; activations cast
    #     at the kernel boundary; f32 accumulation; f32 output) ---
    prep_bf16 = prepare_vision_expert_mlp_weights(w_gate, w_up, w_down,
                                                  block_i=128, dtype=jnp.bfloat16)
    out_bf16 = vision_expert_mlp(hidden_states, token_type_ids, prep_bf16)
    out_bf16 = jax.block_until_ready(out_bf16)
    assert out_bf16.shape == (B, L, D)
    assert out_bf16.dtype == hidden_states.dtype
    assert jnp.allclose(out_bf16, ref, atol=3e-2, rtol=3e-2), "bf16 mismatch vs reference"

    print("KERNEL_OK")
</pallas_src>

<mosaic_0001>
module attributes {stable_mosaic.version = 11 : i64} {
  func.func @_mlp_kernel(%arg0: i32, %arg1: i32, %arg2: memref<128x128xf32, #tpu.memory_space<vmem>>, %arg3: memref<128x256xf32, #tpu.memory_space<vmem>>, %arg4: memref<128x128xf32, #tpu.memory_space<vmem>>, %arg5: memref<128x128xf32, #tpu.memory_space<vmem>>, %arg6: memref<128x128xf32, #tpu.memory_space<vmem>>) attributes {dimension_semantics = [#tpu.dimension_semantics<parallel>, #tpu.dimension_semantics<arbitrary>], iteration_bounds = array<i64: 1, 2>, scalar_prefetch = 0 : i64, scratch_operands = 1 : i64, tpu.core_type = #tpu.core_type<tc>, window_params = [{transform_indices = @transform_0, window_bounds = array<i64: 128, 128>}, {transform_indices = @transform_1, window_bounds = array<i64: 128, 256>}, {transform_indices = @transform_2, window_bounds = array<i64: 128, 128>}, {transform_indices = @transform_3, window_bounds = array<i64: 128, 128>}]} {
    %c0_i32 = arith.constant 0 : i32
    %0 = arith.cmpi eq, %arg1, %c0_i32 : i32
    %1 = arith.extui %0 : i1 to i32
    %c0_i32_0 = arith.constant 0 : i32
    %2 = arith.cmpi ne, %1, %c0_i32_0 : i32
    scf.if %2 {
      %cst_13 = arith.constant 0.000000e+00 : f32
      %23 = vector.broadcast %cst_13 : f32 to vector<128x128xf32>
      %c0_14 = arith.constant 0 : index
      %c0_15 = arith.constant 0 : index
      %24 = vector.load %arg6[%c0_14, %c0_15] : memref<128x128xf32, #tpu.memory_space<vmem>>, vector<128x128xf32>
      tpu.vector_store %arg6[%c0_14, %c0_15], %23 {strides = array<i32>} : memref<128x128xf32, #tpu.memory_space<vmem>>, vector<128x128xf32>,
    } else {
    }
    %c0 = arith.constant 0 : index
    %c0_1 = arith.constant 0 : index
    %3 = vector.load %arg2[%c0, %c0_1] : memref<128x128xf32, #tpu.memory_space<vmem>>, vector<128x128xf32>
    %c0_2 = arith.constant 0 : index
    %c0_3 = arith.constant 0 : index
    %4 = vector.load %arg3[%c0_2, %c0_3] : memref<128x256xf32, #tpu.memory_space<vmem>>, vector<128x256xf32>
    %cst = arith.constant dense<0.000000e+00> : vector<128x256xf32>
    %5 = tpu.matmul %3, %4, %cst {dimension_numbers = #tpu.dot_dimension_numbers<[1], [0], [0], [1], [0, 0, 1, 1], [], []>} : vector<128x128xf32>, vector<128x256xf32>, vector<128x256xf32> -> vector<128x256xf32>
    %6 = vector.extract_strided_slice %5 {offsets = [0, 0], sizes = [128, 128], strides = [1, 1]} : vector<128x256xf32> to vector<128x128xf32>
    %7 = vector.extract_strided_slice %5 {offsets = [0, 128], sizes = [128, 128], strides = [1, 1]} : vector<128x256xf32> to vector<128x128xf32>
    %8 = arith.negf %6 : vector<128x128xf32>
    %9 = math.exp %8 : vector<128x128xf32>
    %cst_4 = arith.constant 1.000000e+00 : f32
    %10 = vector.broadcast %cst_4 : f32 to vector<128x128xf32>
    %11 = arith.addf %10, %9 : vector<128x128xf32>
    %12 = arith.divf %10, %11 : vector<128x128xf32>
    %13 = arith.mulf %6, %12 : vector<128x128xf32>
    %14 = arith.mulf %13, %7 : vector<128x128xf32>
    %c0_5 = arith.constant 0 : index
    %c0_6 = arith.constant 0 : index
    %15 = vector.load %arg6[%c0_5, %c0_6] : memref<128x128xf32, #tpu.memory_space<vmem>>, vector<128x128xf32>
    %c0_7 = arith.constant 0 : index
    %c0_8 = arith.constant 0 : index
    %16 = vector.load %arg4[%c0_7, %c0_8] : memref<128x128xf32, #tpu.memory_space<vmem>>, vector<128x128xf32>
    %cst_9 = arith.constant dense<0.000000e+00> : vector<128x128xf32>
    %17 = tpu.matmul %14, %16, %cst_9 {dimension_numbers = #tpu.dot_dimension_numbers<[1], [0], [0], [1], [0, 0, 1, 1], [], []>} : vector<128x128xf32>, vector<128x128xf32>, vector<128x128xf32> -> vector<128x128xf32>
    %18 = arith.addf %15, %17 : vector<128x128xf32>
    %c0_10 = arith.constant 0 : index
    %c0_11 = arith.constant 0 : index
    %19 = vector.load %arg6[%c0_10, %c0_11] : memref<128x128xf32, #tpu.memory_space<vmem>>, vector<128x128xf32>
    tpu.vector_store %arg6[%c0_10, %c0_11], %18 {strides = array<i32>} : memref<128x128xf32, #tpu.memory_space<vmem>>, vector<128x128xf32>,
    %c1_i32 = arith.constant 1 : i32
    %20 = arith.cmpi eq, %arg1, %c1_i32 : i32
    %21 = arith.extui %20 : i1 to i32
    %c0_i32_12 = arith.constant 0 : i32
    %22 = arith.cmpi ne, %21, %c0_i32_12 : i32
    scf.if %22 {
      %c0_13 = arith.constant 0 : index
      %c0_14 = arith.constant 0 : index
      %23 = vector.load %arg6[%c0_13, %c0_14] : memref<128x128xf32, #tpu.memory_space<vmem>>, vector<128x128xf32>
      %c0_15 = arith.constant 0 : index
      %c0_16 = arith.constant 0 : index
      %24 = vector.load %arg5[%c0_15, %c0_16] : memref<128x128xf32, #tpu.memory_space<vmem>>, vector<128x128xf32>
      tpu.vector_store %arg5[%c0_15, %c0_16], %23 {strides = array<i32>} : memref<128x128xf32, #tpu.memory_space<vmem>>, vector<128x128xf32>,
    } else {
    }
    return
  }
  func.func @transform_0(%arg0: i32, %arg1: i32) -> (i32, i32) {
    %c0_i32 = arith.constant 0 : i32
    %c0_i32_0 = arith.constant 0 : i32
    return %arg0, %c0_i32 : i32, i32
  }
  func.func @transform_1(%arg0: i32, %arg1: i32) -> (i32, i32) {
    %c0_i32 = arith.constant 0 : i32
    %c0_i32_0 = arith.constant 0 : i32
    return %c0_i32, %arg1 : i32, i32
  }
  func.func @transform_2(%arg0: i32, %arg1: i32) -> (i32, i32) {
    %c0_i32 = arith.constant 0 : i32
    %c0_i32_0 = arith.constant 0 : i32
    return %arg1, %c0_i32 : i32, i32
  }
  func.func @transform_3(%arg0: i32, %arg1: i32) -> (i32, i32) {
    %c0_i32 = arith.constant 0 : i32
    %c0_i32_0 = arith.constant 0 : i32
    return %arg0, %c0_i32 : i32, i32
  }
}

</mosaic_0001>

<llo_original>
// kernel: _vision_expert_mlp_2d.1
$region0: #{_vision_expert_mlp_2d.1}
  #allocation0 [shape = 'u32[]', space=smem, size = 0x4, offset = 0x4, fixed_abs, tag = 'smem constant byte address 0x4 - core index']
  #allocation1 [shape = 'u32[144,128]{1,0:T(1,128)}', space=vmem, size = 0x12000, scoped, tag = 'internal scratch']
  #allocation2 [shape = 'f32[128,128]{1,0:T(8,128)}', space=vmem, size = 0x10000, scoped, tag = 'scratch operand']
  %s0 = inlined_call_operand.vmem [shape: f32[128,128], index: 0, kind: input, shape index: {}]
  %s1 = inlined_call_operand.hbm [shape: f32[128,512], index: 1, kind: input, shape index: {}]
  %s2 = inlined_call_operand.hbm [shape: f32[256,128], index: 2, kind: input, shape index: {}]
  %s3 = inlined_call_operand.vmem [shape: f32[128,128], index: 3, kind: output, shape index: {}]
  %s4 = sld [smem:[#allocation0]]
  $region61: #{_vision_expert_mlp_2d.1} parent=0
    _
  %s6 = ssub.s32 1, %s4
  %s7 = scalar_select 0, %s6, %s4
  $region1: #{_vision_expert_mlp_2d.1} parent=0
    #allocation3 [shape = 'u8[262144]{0}', space=vmem, size = 0x40000, scoped, tag = 'input window, operand 1']
    #allocation4 [shape = 's32[2]{0}', space=sflag, size = 0x8, scoped, tag = 'scoped memory for _vision_expert_mlp_2d.1']
    #allocation5 [shape = 'u8[131072]{0}', space=vmem, size = 0x20000, scoped, tag = 'input window, operand 2']
    #allocation6 [shape = 's32[2]{0}', space=sflag, size = 0x8, scoped, tag = 'scoped memory for _vision_expert_mlp_2d.1']
    %8 = vsyncpa [#allocation4], 0
    %s9 = scalar_lea.sflag [#allocation4], 1
    %10 = vsyncpa %s9, 0
    %11 = vsyncpa [#allocation6], 0
    %s12 = scalar_lea.sflag [#allocation6], 1
    %13 = vsyncpa %s12, 0
    loop: start=0, step=1, limit=4
    $region2: #{_vision_expert_mlp_2d.1} parent=1 // loop_pre_header
      _
    $region3: #{_vision_expert_mlp_2d.1} parent=1 // loop_header
      %s15 = sphi 0, %s19
      %p16 = scmp.ge.s32.totalorder %s15, 4
      %s22 = sphi 0, %s34
      %s23 = sphi 0, %s30
      %s24 = sphi 0, %s22
      %s25 = sphi 0, %s23
      %s26 = sphi 0, %s24
      %s27 = sphi 0, %s25
      %s37 = sphi 0, %s39
      %s40 = sphi 0, %s37
      %s41 = sphi 0, %s40
      %s57 = sphi 0, %s41
      %s63 = sphi 0, %s65
      %s66 = sphi 0, %s63
      %s67 = sphi 0, %s66
      %s83 = sphi 0, %s67
      %s89 = sphi 0, %s91
      %s92 = sphi 0, %s89
      %s93 = sphi 0, %s92
      %s109 = sphi 0, %s93
      %s115 = sphi 0, %s117
      %s118 = sphi 0, %s115
      %s119 = sphi 0, %s118
      %s135 = sphi 0, %s119
    $region4: #{_vision_expert_mlp_2d.1} parent=1 // loop_header_branch
      %18 = sbr.rel (%p16) target = $region8
    $region5: #{_vision_expert_mlp_2d.1} parent=1 // loop_body
      %s20 = ssub.s32 %s15, 1
      %s21 = ssub.s32 %s15, 2
      %s28 = sadd.s32 1, %s23
      %p29 = scmp.ge.s32.totalorder %s28, 2
      %s30 = scalar_select %p29, 0, %s28
      %s31 = sadd.s32 1, %s22
      %s32 = scalar_select %p29, %s31, %s22
      %p33 = scmp.ge.s32.totalorder %s32, 1
      %s34 = scalar_select %p33, 0, %s32
      %s35 = ssub.s32 %s22, %s34
      %p36 = scmp.eq.s32.totalorder %s35, 0
      %s38 = sadd.s32 %s37, 1
      %s39 = scalar_select %p36, %s37, %s38
      %p42 = pneg %p36
      %p43 = scmp.eq.s32.totalorder %s15, 1
      %p44 = por %p42, %p43
      %p45 = scmp.ne.s32.totalorder %s37, %s40
      %p46 = scmp.eq.s32.totalorder %s15, 0
      %p47 = por %p45, %p46
      %p48 = scmp.ne.s32.totalorder %s37, %s40
      %p49 = scmp.eq.s32.totalorder %s20, 1
      %p50 = por %p48, %p49
      %p51 = scmp.ne.s32.totalorder %s40, %s41
      %p52 = scmp.eq.s32.totalorder %s20, 0
      %p53 = por %p51, %p52
      %p54 = scmp.ne.s32.totalorder %s40, %s41
      %p55 = scmp.eq.s32.totalorder %s21, 1
      %p56 = por %p54, %p55
      %p58 = scmp.ne.s32.totalorder %s41, %s57
      %p59 = scmp.eq.s32.totalorder %s21, 0
      %p60 = por %p58, %p59
      %s61 = ssub.s32 %s23, %s30
      %p62 = scmp.eq.s32.totalorder %s61, 0
      %s64 = sadd.s32 %s63, 1
      %s65 = scalar_select %p62, %s63, %s64
      %p68 = pneg %p62
      %p69 = scmp.eq.s32.totalorder %s15, 1
      %p70 = por %p68, %p69
      %p71 = scmp.ne.s32.totalorder %s63, %s66
      %p72 = scmp.eq.s32.totalorder %s15, 0
      %p73 = por %p71, %p72
      %p74 = scmp.ne.s32.totalorder %s63, %s66
      %p75 = scmp.eq.s32.totalorder %s20, 1
      %p76 = por %p74, %p75
      %p77 = scmp.ne.s32.totalorder %s66, %s67
      %p78 = scmp.eq.s32.totalorder %s20, 0
      %p79 = por %p77, %p78
      %p80 = scmp.ne.s32.totalorder %s66, %s67
      %p81 = scmp.eq.s32.totalorder %s21, 1
      %p82 = por %p80, %p81
      %p84 = scmp.ne.s32.totalorder %s67, %s83
      %p85 = scmp.eq.s32.totalorder %s21, 0
      %p86 = por %p84, %p85
      %s87 = ssub.s32 %s23, %s30
      %p88 = scmp.eq.s32.totalorder %s87, 0
      %s90 = sadd.s32 %s89, 1
      %s91 = scalar_select %p88, %s89, %s90
      %p94 = pneg %p88
      %p95 = scmp.eq.s32.totalorder %s15, 1
      %p96 = por %p94, %p95
      %p97 = scmp.ne.s32.totalorder %s89, %s92
      %p98 = scmp.eq.s32.totalorder %s15, 0
      %p99 = por %p97, %p98
      %p100 = scmp.ne.s32.totalorder %s89, %s92
      %p101 = scmp.eq.s32.totalorder %s20, 1
      %p102 = por %p100, %p101
      %p103 = scmp.ne.s32.totalorder %s92, %s93
      %p104 = scmp.eq.s32.totalorder %s20, 0
      %p105 = por %p103, %p104
      %p106 = scmp.ne.s32.totalorder %s92, %s93
      %p107 = scmp.eq.s32.totalorder %s21, 1
      %p108 = por %p106, %p107
      %p110 = scmp.ne.s32.totalorder %s93, %s109
      %p111 = scmp.eq.s32.totalorder %s21, 0
      %p112 = por %p110, %p111
      %s113 = ssub.s32 %s22, %s34
      %p114 = scmp.eq.s32.totalorder %s113, 0
      %s116 = sadd.s32 %s115, 1
      %s117 = scalar_select %p114, %s115, %s116
      %p120 = pneg %p114
      %p121 = scmp.eq.s32.totalorder %s15, 1
      %p122 = por %p120, %p121
      %p123 = scmp.ne.s32.totalorder %s115, %s118
      %p124 = scmp.eq.s32.totalorder %s15, 0
      %p125 = por %p123, %p124
      %p126 = scmp.ne.s32.totalorder %s115, %s118
      %p127 = scmp.eq.s32.totalorder %s20, 1
      %p128 = por %p126, %p127
      %p129 = scmp.ne.s32.totalorder %s118, %s119
      %p130 = scmp.eq.s32.totalorder %s20, 0
      %p131 = por %p129, %p130
      %p132 = scmp.ne.s32.totalorder %s118, %s119
      %p133 = scmp.eq.s32.totalorder %s21, 1
      %p134 = por %p132, %p133
      %p136 = scmp.ne.s32.totalorder %s119, %s135
      %p137 = scmp.eq.s32.totalorder %s21, 0
      %p138 = por %p136, %p137
      %p139 = scmp.le.s32.totalorder 1, %s15
      %p140 = scmp.lt.s32.totalorder %s15, 3
      %p141 = pnand %p139, %p140
      %p142 = pneg %p141
      // Predicated region
      $region9: #{_vision_expert_mlp_2d.1} parent=5 // pred_check
        _
      $region10: #{_vision_expert_mlp_2d.1} parent=5 // pred_check_branch
        %144 = sbr.rel (%p141) target = $region12
      $region11: #{_vision_expert_mlp_2d.1} parent=5 // pred_region
        %s145 = ssub.s32 %s15, 1
        // Predicated region
        $region13: #{_vision_expert_mlp_2d.1} parent=11 // pred_check
          %p146 = pneg %p53
        $region14: #{_vision_expert_mlp_2d.1} parent=11 // pred_check_branch
          %148 = sbr.rel (%p146) target = $region16
        $region15: #{_vision_expert_mlp_2d.1} parent=11 // pred_region
          %s149 = smul.u32 16, %s24
          %p150 = scmp.lt.s32.totalorder %s149, 15
          %s151 = scalar_select %p150, %s149, 15
          %s152 = smul.addr %s151, 8
          %s153 = scalar_lea.vmem %s0, %s152
          %s154 = smul.u32 16, %s24
        $region16: #{_vision_expert_mlp_2d.1} parent=11 // pred_fallthru
          _
      $region12: #{_vision_expert_mlp_2d.1} parent=5 // pred_fallthru
        _
      %p155 = scmp.lt.s32.totalorder %s15, 2
      // Predicated region
      $region17: #{_vision_expert_mlp_2d.1} parent=5 // pred_check
        %p156 = pneg %p155
      $region18: #{_vision_expert_mlp_2d.1} parent=5 // pred_check_branch
        %158 = sbr.rel (%p156) target = $region20
      $region19: #{_vision_expert_mlp_2d.1} parent=5 // pred_region
        // Predicated region
        $region21: #{_vision_expert_mlp_2d.1} parent=19 // pred_check
          %p159 = pneg %p73
        $region22: #{_vision_expert_mlp_2d.1} parent=19 // pred_check_branch
          %161 = sbr.rel (%p159) target = $region24
        $region23: #{_vision_expert_mlp_2d.1} parent=19 // pred_region
          %s162 = sand.u32 %s63, 1
          %s163 = scalar_lea.sflag [#allocation4], %s162
          %s164 = sand.u32 %s63, 1
          %s165 = smul.addr %s164, 256
          %s166 = scalar_lea.vmem [#allocation3], %s165
          %s167 = smul.u32 2, %s23
          %s169 = ssub.s32 4096, 4096
          %170 = vsyncadd %s163, %s169
          %s171 = smul.addr %s167, 128
          %s172 = scalar_lea.hbm %s1, %s171
          %s173 = sshll.u32 %s166, 4
          %s174 = int_to_ptr.vmem [resolvable:$true] %s173
          %179 = dma.hbm_to_vmem [thread:$0]  %s172, 4096, %s174, %s163, 512, 256, 16
        $region24: #{_vision_expert_mlp_2d.1} parent=19 // pred_fallthru
          _
        // Predicated region
        $region25: #{_vision_expert_mlp_2d.1} parent=19 // pred_check
          %p180 = pneg %p99
        $region26: #{_vision_expert_mlp_2d.1} parent=19 // pred_check_branch
          %182 = sbr.rel (%p180) target = $region28
        $region27: #{_vision_expert_mlp_2d.1} parent=19 // pred_region
          %s183 = sand.u32 %s89, 1
          %s184 = scalar_lea.sflag [#allocation6], %s183
          %s185 = sand.u32 %s89, 1
          %s186 = smul.addr %s185, 128
          %s187 = scalar_lea.vmem [#allocation5], %s186
          %s188 = smul.u32 16, %s23
          %s190 = ssub.s32 2048, 2048
          %191 = vsyncadd %s184, %s190
          %s192 = smul.addr %s188, 128
          %s193 = scalar_lea.hbm %s2, %s192
          %s194 = sshll.u32 %s187, 4
          %s195 = int_to_ptr.vmem [resolvable:$true] %s194
          %200 = dma.hbm_to_vmem [thread:$0]  %s193, 2048, %s195, %s184, 128, 128, 8
        $region28: #{_vision_expert_mlp_2d.1} parent=19 // pred_fallthru
          _
      $region20: #{_vision_expert_mlp_2d.1} parent=5 // pred_fallthru
        _
      %p201 = scmp.le.s32.totalorder 1, %s15
      %p202 = scmp.lt.s32.totalorder %s15, 3
      %p203 = pnand %p201, %p202
      %p204 = pneg %p203
      // Predicated region
      $region29: #{_vision_expert_mlp_2d.1} parent=5 // pred_check
        _
      $region30: #{_vision_expert_mlp_2d.1} parent=5 // pred_check_branch
        %206 = sbr.rel (%p203) target = $region32
      $region31: #{_vision_expert_mlp_2d.1} parent=5 // pred_region
        %s207 = ssub.s32 %s15, 1
        %s208 = sand.u32 %s66, 1
        %s209 = scalar_lea.sflag [#allocation4], %s208
        %s210 = sand.u32 %s66, 1
        %s211 = smul.addr %s210, 256
        %s212 = scalar_lea.vmem [#allocation3], %s211
        // Predicated region
        $region33: #{_vision_expert_mlp_2d.1} parent=31 // pred_check
          %p213 = pneg %p79
        $region34: #{_vision_expert_mlp_2d.1} parent=31 // pred_check_branch
          %215 = sbr.rel (%p213) target = $region36
        $region35: #{_vision_expert_mlp_2d.1} parent=31 // pred_region
          %216 = dma.done %s209, 4096
        $region36: #{_vision_expert_mlp_2d.1} parent=31 // pred_fallthru
          _
        %s217 = sand.u32 %s92, 1
        %s218 = scalar_lea.sflag [#allocation6], %s217
        %s219 = sand.u32 %s92, 1
        %s220 = smul.addr %s219, 128
        %s221 = scalar_lea.vmem [#allocation5], %s220
        // Predicated region
        $region37: #{_vision_expert_mlp_2d.1} parent=31 // pred_check
          %p222 = pneg %p105
        $region38: #{_vision_expert_mlp_2d.1} parent=31 // pred_check_branch
          %224 = sbr.rel (%p222) target = $region40
        $region39: #{_vision_expert_mlp_2d.1} parent=31 // pred_region
          %225 = dma.done %s218, 2048
        $region40: #{_vision_expert_mlp_2d.1} parent=31 // pred_fallthru
          _
        %s226 = smul.u32 16, %s24
        %p227 = scmp.lt.s32.totalorder %s226, 15
        %s228 = scalar_select %p227, %s226, 15
        %s229 = smul.addr %s228, 8
        %s230 = scalar_lea.vmem %s0, %s229
        %p231 = pneg %p53
        %p232 = pneg %p50
        %s233 = sand.u32 %s66, 1
        %s234 = scalar_lea.sflag [#allocation4], %s233
        %s235 = sand.u32 %s66, 1
        %s236 = smul.addr %s235, 256
        %s237 = scalar_lea.vmem [#allocation3], %s236
        %p238 = pneg %p79
        %p239 = pneg %p76
        %s240 = sand.u32 %s92, 1
        %s241 = scalar_lea.sflag [#allocation6], %s240
        %s242 = sand.u32 %s92, 1
        %s243 = smul.addr %s242, 128
        %s244 = scalar_lea.vmem [#allocation5], %s243
        %p245 = pneg %p105
        %p246 = pneg %p102
        %p247 = pneg %p131
        %p248 = pneg %p128
        %s249 = smul.u32 16, %s24
        %p250 = scmp.lt.s32.totalorder %s249, 15
        %s251 = scalar_select %p250, %s249, 15
        %s252 = smul.addr %s251, 8
        %s253 = scalar_lea.vmem %s3, %s252
        %s254 = smul.u32 16, %s24
        %p255 = scmp.lt.s32.totalorder %s254, 15
        %s256 = scalar_select %p255, %s254, 15
        %s257 = smul.addr %s256, 8
        %s258 = scalar_lea.vmem %s0, %s257
        %s259 = smul.u32 16, %s24
        %s260 = smul.u32 2, %s25
        %s261 = smul.u32 16, %s25
        %s262 = smul.u32 16, %s24
        %p263 = scmp.lt.s32.totalorder %s262, 15
        %s264 = scalar_select %p263, %s262, 15
        %s265 = smul.addr %s264, 8
        %s266 = scalar_lea.vmem %s3, %s265
        %s267 = smul.u32 16, %s24
        %p268 = scmp.eq.s32.totalorder %s25, 0
        // Predicated region
        $region41: #{_vision_expert_mlp_2d.1} parent=31 // pred_check
          %p269 = pneg %p268
        $region42: #{_vision_expert_mlp_2d.1} parent=31 // pred_check_branch
          %271 = sbr.rel (%p269) target = $region44
        $region43: #{_vision_expert_mlp_2d.1} parent=31 // pred_region
          %272 = vst [vmem:[#allocation2] sm:$0xff] 0.0
          %273 = vst [vmem:[#allocation2 + $0x8] sm:$0xff] 0.0
          %274 = vst [vmem:[#allocation2 + $0x10] sm:$0xff] 0.0
          %275 = vst [vmem:[#allocation2 + $0x18] sm:$0xff] 0.0
          %276 = vst [vmem:[#allocation2 + $0x20] sm:$0xff] 0.0
          %277 = vst [vmem:[#allocation2 + $0x28] sm:$0xff] 0.0
          %278 = vst [vmem:[#allocation2 + $0x30] sm:$0xff] 0.0
          %279 = vst [vmem:[#allocation2 + $0x38] sm:$0xff] 0.0
          %280 = vst [vmem:[#allocation2 + $0x40] sm:$0xff] 0.0
          %281 = vst [vmem:[#allocation2 + $0x48] sm:$0xff] 0.0
          %282 = vst [vmem:[#allocation2 + $0x50] sm:$0xff] 0.0
          %283 = vst [vmem:[#allocation2 + $0x58] sm:$0xff] 0.0
          %284 = vst [vmem:[#allocation2 + $0x60] sm:$0xff] 0.0
          %285 = vst [vmem:[#allocation2 + $0x68] sm:$0xff] 0.0
          %286 = vst [vmem:[#allocation2 + $0x70] sm:$0xff] 0.0
          %287 = vst [vmem:[#allocation2 + $0x78] sm:$0xff] 0.0
        $region44: #{_vision_expert_mlp_2d.1} parent=31 // pred_fallthru
          _
        %v288 = vld [vmem:[%s258] sm:$0xff]
        %v289 = vld [vmem:[%s258 + $0x8] sm:$0xff]
        %v290 = vld [vmem:[%s258 + $0x10] sm:$0xff]
        %v291 = vld [vmem:[%s258 + $0x18] sm:$0xff]
        %v292 = vld [vmem:[%s258 + $0x20] sm:$0xff]
        %v293 = vld [vmem:[%s258 + $0x28] sm:$0xff]
        %v294 = vld [vmem:[%s258 + $0x30] sm:$0xff]
        %v295 = vld [vmem:[%s258 + $0x38] sm:$0xff]
        %v296 = vld [vmem:[%s258 + $0x40] sm:$0xff]
        %v297 = vld [vmem:[%s258 + $0x48] sm:$0xff]
        %v298 = vld [vmem:[%s258 + $0x50] sm:$0xff]
        %v299 = vld [vmem:[%s258 + $0x58] sm:$0xff]
        %v300 = vld [vmem:[%s258 + $0x60] sm:$0xff]
        %v301 = vld [vmem:[%s258 + $0x68] sm:$0xff]
        %v302 = vld [vmem:[%s258 + $0x70] sm:$0xff]
        %v303 = vld [vmem:[%s258 + $0x78] sm:$0xff]
        %v304 = vld [vmem:[%s212] sm:$0xff]
        %v305 = vld [vmem:[%s212 + $0x8] sm:$0xff]
        %v306 = vld [vmem:[%s212 + $0x10] sm:$0xff]
        %v307 = vld [vmem:[%s212 + $0x18] sm:$0xff]
        %v308 = vld [vmem:[%s212 + $0x20] sm:$0xff]
        %v309 = vld [vmem:[%s212 + $0x28] sm:$0xff]
        %v310 = vld [vmem:[%s212 + $0x30] sm:$0xff]
        %v311 = vld [vmem:[%s212 + $0x38] sm:$0xff]
        %v312 = vld [vmem:[%s212 + $0x40] sm:$0xff]
        %v313 = vld [vmem:[%s212 + $0x48] sm:$0xff]
        %v314 = vld [vmem:[%s212 + $0x50] sm:$0xff]
        %v315 = vld [vmem:[%s212 + $0x58] sm:$0xff]
        %v316 = vld [vmem:[%s212 + $0x60] sm:$0xff]
        %v317 = vld [vmem:[%s212 + $0x68] sm:$0xff]
        %v318 = vld [vmem:[%s212 + $0x70] sm:$0xff]
        %v319 = vld [vmem:[%s212 + $0x78] sm:$0xff]
        %v320 = vld [vmem:[%s212 + $0x80] sm:$0xff]
        %v321 = vld [vmem:[%s212 + $0x88] sm:$0xff]
        %v322 = vld [vmem:[%s212 + $0x90] sm:$0xff]
        %v323 = vld [vmem:[%s212 + $0x98] sm:$0xff]
        %v324 = vld [vmem:[%s212 + $0xa0] sm:$0xff]
        %v325 = vld [vmem:[%s212 + $0xa8] sm:$0xff]
        %v326 = vld [vmem:[%s212 + $0xb0] sm:$0xff]
        %v327 = vld [vmem:[%s212 + $0xb8] sm:$0xff]
        %v328 = vld [vmem:[%s212 + $0xc0] sm:$0xff]
        %v329 = vld [vmem:[%s212 + $0xc8] sm:$0xff]
        %v330 = vld [vmem:[%s212 + $0xd0] sm:$0xff]
        %v331 = vld [vmem:[%s212 + $0xd8] sm:$0xff]
        %v332 = vld [vmem:[%s212 + $0xe0] sm:$0xff]
        %v333 = vld [vmem:[%s212 + $0xe8] sm:$0xff]
        %v334 = vld [vmem:[%s212 + $0xf0] sm:$0xff]
        %v335 = vld [vmem:[%s212 + $0xf8] sm:$0xff]
        %336 = vmatprep.subr.mxu0 %v335
        %337 = vmatpush1.msra.mxu0 %v334
        %338 = vmatprep.subr.mxu0 %v333
        %339 = vmatpush1.msra.mxu0 %v332
        %340 = vmatprep.subr.mxu0 %v331
        %341 = vmatpush1.msra.mxu0 %v330
        %342 = vmatprep.subr.mxu0 %v329
        %343 = vmatpush1.msra.mxu0 %v328
        %344 = vmatprep.subr.mxu0 %v327
        %345 = vmatpush1.msra.mxu0 %v326
        %346 = vmatprep.subr.mxu0 %v325
        %347 = vmatpush1.msra.mxu0 %v324
        %348 = vmatprep.subr.mxu0 %v323
        %349 = vmatpush1.msra.mxu0 %v322
        %350 = vmatprep.subr.mxu0 %v321
        %351 = vmatpush1.msra.mxu0 %v320
        %352 = vmatprep.subr.mxu0 %v319
        %353 = vmatpush1.msra.mxu0 %v318
        %354 = vmatprep.subr.mxu0 %v317
        %355 = vmatpush1.msra.mxu0 %v316
        %356 = vmatprep.subr.mxu0 %v315
        %357 = vmatpush1.msra.mxu0 %v314
        %358 = vmatprep.subr.mxu0 %v313
        %359 = vmatpush1.msra.mxu0 %v312
        %360 = vmatprep.subr.mxu0 %v311
        %361 = vmatpush1.msra.mxu0 %v310
        %362 = vmatprep.subr.mxu0 %v309
        %363 = vmatpush1.msra.mxu0 %v308
        %364 = vmatprep.subr.mxu0 %v307
        %365 = vmatpush1.msra.mxu0 %v306
        %366 = vmatprep.subr.mxu0 %v305
        %367 = vmatpush1.msra.mxu0 %v304
        %368 = vmatprep.subr.mxu0 0.0
        %369 = vmatpush2.msra.mxu0 0.0
        %370 = vmatprep.subr.mxu0 0.0
        %371 = vmatpush2.msra.mxu0 0.0
        %372 = vmatprep.subr.mxu0 0.0
        %373 = vmatpush2.msra.mxu0 0.0
        %374 = vmatprep.subr.mxu0 0.0
        %375 = vmatpush2.msra.mxu0 0.0
        %376 = vmatprep.subr.mxu0 0.0
        %377 = vmatpush2.msra.mxu0 0.0
        %378 = vmatprep.subr.mxu0 0.0
        %379 = vmatpush2.msra.mxu0 0.0
        %380 = vmatprep.subr.mxu0 0.0
        %381 = vmatpush2.msra.mxu0 0.0
        %382 = vmatprep.subr.mxu0 0.0
        %383 = vmatpush2.msra.mxu0 0.0
        %384 = vmatprep.subr.mxu0 0.0
        %385 = vmatpush2.msra.mxu0 0.0
        %386 = vmatprep.subr.mxu0 0.0
        %387 = vmatpush2.msra.mxu0 0.0
        %388 = vmatprep.subr.mxu0 0.0
        %389 = vmatpush2.msra.mxu0 0.0
        %390 = vmatprep.subr.mxu0 0.0
        %391 = vmatpush2.msra.mxu0 0.0
        %392 = vmatprep.subr.mxu0 0.0
        %393 = vmatpush2.msra.mxu0 0.0
        %394 = vmatprep.subr.mxu0 0.0
        %395 = vmatpush2.msra.mxu0 0.0
        %396 = vmatprep.subr.mxu0 0.0
        %397 = vmatpush2.msra.mxu0 0.0
        %398 = vmatprep.subr.mxu0 0.0
        %399 = vmatpush2.msra.mxu0 0.0
        %400 = vmatprep.mubr.f32.mxu0 0.0
        %401 = vmatmul.mubr.f32.gmra.mxu0 %v288
        %v402 = vpop.f32.mrf.mxu0
        %v403 = vadd.f32 0.0, %v402
        %v404 = vpop.f32.mrf.mxu0
        %v405 = vadd.f32 0.0, %v404
        %406 = vmatprep.mubr.f32.mxu0 0.0
        %407 = vmatmul.mubr.f32.gmra.mxu0 %v289
        %v408 = vpop.f32.mrf.mxu0
        %v409 = vadd.f32 0.0, %v408
        %v410 = vpop.f32.mrf.mxu0
        %v411 = vadd.f32 0.0, %v410
        %412 = vmatprep.mubr.f32.mxu0 0.0
        %413 = vmatmul.mubr.f32.gmra.mxu0 %v290
        %v414 = vpop.f32.mrf.mxu0
        %v415 = vadd.f32 0.0, %v414
        %v416 = vpop.f32.mrf.mxu0
        %v417 = vadd.f32 0.0, %v416
        %418 = vmatprep.mubr.f32.mxu0 0.0
        %419 = vmatmul.mubr.f32.gmra.mxu0 %v291
        %v420 = vpop.f32.mrf.mxu0
        %v421 = vadd.f32 0.0, %v420
        %v422 = vpop.f32.mrf.mxu0
        %v423 = vadd.f32 0.0, %v422
        %424 = vmatprep.mubr.f32.mxu0 0.0
        %425 = vmatmul.mubr.f32.gmra.mxu0 %v292
        %v426 = vpop.f32.mrf.mxu0
        %v427 = vadd.f32 0.0, %v426
        %v428 = vpop.f32.mrf.mxu0
        %v429 = vadd.f32 0.0, %v428
        %430 = vmatprep.mubr.f32.mxu0 0.0
        %431 = vmatmul.mubr.f32.gmra.mxu0 %v293
        %v432 = vpop.f32.mrf.mxu0
        %v433 = vadd.f32 0.0, %v432
        %v434 = vpop.f32.mrf.mxu0
        %v435 = vadd.f32 0.0, %v434
        %436 = vmatprep.mubr.f32.mxu0 0.0
        %437 = vmatmul.mubr.f32.gmra.mxu0 %v294
        %v438 = vpop.f32.mrf.mxu0
        %v439 = vadd.f32 0.0, %v438
        %v440 = vpop.f32.mrf.mxu0
        %v441 = vadd.f32 0.0, %v440
        %442 = vmatprep.mubr.f32.mxu0 0.0
        %443 = vmatmul.mubr.f32.gmra.mxu0 %v295
        %v444 = vpop.f32.mrf.mxu0
        %v445 = vadd.f32 0.0, %v444
        %v446 = vpop.f32.mrf.mxu0
        %v447 = vadd.f32 0.0, %v446
        %448 = vmatprep.mubr.f32.mxu0 0.0
        %449 = vmatmul.mubr.f32.gmra.mxu0 %v296
        %v450 = vpop.f32.mrf.mxu0
        %v451 = vadd.f32 0.0, %v450
        %v452 = vpop.f32.mrf.mxu0
        %v453 = vadd.f32 0.0, %v452
        %454 = vmatprep.mubr.f32.mxu0 0.0
        %455 = vmatmul.mubr.f32.gmra.mxu0 %v297
        %v456 = vpop.f32.mrf.mxu0
        %v457 = vadd.f32 0.0, %v456
        %v458 = vpop.f32.mrf.mxu0
        %v459 = vadd.f32 0.0, %v458
        %460 = vmatprep.mubr.f32.mxu0 0.0
        %461 = vmatmul.mubr.f32.gmra.mxu0 %v298
        %v462 = vpop.f32.mrf.mxu0
        %v463 = vadd.f32 0.0, %v462
        %v464 = vpop.f32.mrf.mxu0
        %v465 = vadd.f32 0.0, %v464
        %466 = vmatprep.mubr.f32.mxu0 0.0
        %467 = vmatmul.mubr.f32.gmra.mxu0 %v299
        %v468 = vpop.f32.mrf.mxu0
        %v469 = vadd.f32 0.0, %v468
        %v470 = vpop.f32.mrf.mxu0
        %v471 = vadd.f32 0.0, %v470
        %472 = vmatprep.mubr.f32.mxu0 0.0
        %473 = vmatmul.mubr.f32.gmra.mxu0 %v300
        %v474 = vpop.f32.mrf.mxu0
        %v475 = vadd.f32 0.0, %v474
        %v476 = vpop.f32.mrf.mxu0
        %v477 = vadd.f32 0.0, %v476
        %478 = vmatprep.mubr.f32.mxu0 0.0
        %479 = vmatmul.mubr.f32.gmra.mxu0 %v301
        %v480 = vpop.f32.mrf.mxu0
        %v481 = vadd.f32 0.0, %v480
        %v482 = vpop.f32.mrf.mxu0
        %v483 = vadd.f32 0.0, %v482
        %484 = vmatprep.mubr.f32.mxu0 0.0
        %485 = vmatmul.mubr.f32.gmra.mxu0 %v302
        %v486 = vpop.f32.mrf.mxu0
        %v487 = vadd.f32 0.0, %v486
        %v488 = vpop.f32.mrf.mxu0
        %v489 = vadd.f32 0.0, %v488
        %490 = vmatprep.mubr.f32.mxu0 0.0
        %491 = vmatmul.mubr.f32.gmra.mxu0 %v303
        %v492 = vpop.f32.mrf.mxu0
        %v493 = vadd.f32 0.0, %v492
        %v494 = vpop.f32.mrf.mxu0
        %v495 = vadd.f32 0.0, %v494
        %496 = vdwg.mxu0
        %v497 = vxor.u32 %v403, 2147483648
        %v498 = vxor.u32 %v409, 2147483648
        %v499 = vxor.u32 %v415, 2147483648
        %v500 = vxor.u32 %v421, 2147483648
        %v501 = vxor.u32 %v427, 2147483648
        %v502 = vxor.u32 %v433, 2147483648
        %v503 = vxor.u32 %v439, 2147483648
        %v504 = vxor.u32 %v445, 2147483648
        %v505 = vxor.u32 %v451, 2147483648
        %v506 = vxor.u32 %v457, 2147483648
        %v507 = vxor.u32 %v463, 2147483648
        %v508 = vxor.u32 %v469, 2147483648
        %v509 = vxor.u32 %v475, 2147483648
        %v510 = vxor.u32 %v481, 2147483648
        %v511 = vxor.u32 %v487, 2147483648
        %v512 = vxor.u32 %v493, 2147483648
        %v513 = vmul.f32 %v497, 1.442695
        %v514 = vpow.pop %v513
        %v515 = vmul.f32 %v498, 1.442695
        %v516 = vpow.pop %v515
        %v517 = vmul.f32 %v499, 1.442695
        %v518 = vpow.pop %v517
        %v519 = vmul.f32 %v500, 1.442695
        %v520 = vpow.pop %v519
        %v521 = vmul.f32 %v501, 1.442695
        %v522 = vpow.pop %v521
        %v523 = vmul.f32 %v502, 1.442695
        %v524 = vpow.pop %v523
        %v525 = vmul.f32 %v503, 1.442695
        %v526 = vpow.pop %v525
        %v527 = vmul.f32 %v504, 1.442695
        %v528 = vpow.pop %v527
        %v529 = vmul.f32 %v505, 1.442695
        %v530 = vpow.pop %v529
        %v531 = vmul.f32 %v506, 1.442695
        %v532 = vpow.pop %v531
        %v533 = vmul.f32 %v507, 1.442695
        %v534 = vpow.pop %v533
        %v535 = vmul.f32 %v508, 1.442695
        %v536 = vpow.pop %v535
        %v537 = vmul.f32 %v509, 1.442695
        %v538 = vpow.pop %v537
        %v539 = vmul.f32 %v510, 1.442695
        %v540 = vpow.pop %v539
        %v541 = vmul.f32 %v511, 1.442695
        %v542 = vpow.pop %v541
        %v543 = vmul.f32 %v512, 1.442695
        %v544 = vpow.pop %v543
        %v545 = vadd.f32 %v514, 1.0
        %v546 = vadd.f32 %v516, 1.0
        %v547 = vadd.f32 %v518, 1.0
        %v548 = vadd.f32 %v520, 1.0
        %v549 = vadd.f32 %v522, 1.0
        %v550 = vadd.f32 %v524, 1.0
        %v551 = vadd.f32 %v526, 1.0
        %v552 = vadd.f32 %v528, 1.0
        %v553 = vadd.f32 %v530, 1.0
        %v554 = vadd.f32 %v532, 1.0
        %v555 = vadd.f32 %v534, 1.0
        %v556 = vadd.f32 %v536, 1.0
        %v557 = vadd.f32 %v538, 1.0
        %v558 = vadd.f32 %v540, 1.0
        %v559 = vadd.f32 %v542, 1.0
        %v560 = vadd.f32 %v544, 1.0
        %v561 = vrcp.pop %v545
        %v562 = vmul.f32 1.0, %v561
        %v563 = vrcp.pop %v546
        %v564 = vmul.f32 1.0, %v563
        %v565 = vrcp.pop %v547
        %v566 = vmul.f32 1.0, %v565
        %v567 = vrcp.pop %v548
        %v568 = vmul.f32 1.0, %v567
        %v569 = vrcp.pop %v549
        %v570 = vmul.f32 1.0, %v569
        %v571 = vrcp.pop %v550
        %v572 = vmul.f32 1.0, %v571
        %v573 = vrcp.pop %v551
        %v574 = vmul.f32 1.0, %v573
        %v575 = vrcp.pop %v552
        %v576 = vmul.f32 1.0, %v575
        %v577 = vrcp.pop %v553
        %v578 = vmul.f32 1.0, %v577
        %v579 = vrcp.pop %v554
        %v580 = vmul.f32 1.0, %v579
        %v581 = vrcp.pop %v555
        %v582 = vmul.f32 1.0, %v581
        %v583 = vrcp.pop %v556
        %v584 = vmul.f32 1.0, %v583
        %v585 = vrcp.pop %v557
        %v586 = vmul.f32 1.0, %v585
        %v587 = vrcp.pop %v558
        %v588 = vmul.f32 1.0, %v587
        %v589 = vrcp.pop %v559
        %v590 = vmul.f32 1.0, %v589
        %v591 = vrcp.pop %v560
        %v592 = vmul.f32 1.0, %v591
        %v593 = vmul.f32 %v403, %v562
        %v594 = vmul.f32 %v409, %v564
        %v595 = vmul.f32 %v415, %v566
        %v596 = vmul.f32 %v421, %v568
        %v597 = vmul.f32 %v427, %v570
        %v598 = vmul.f32 %v433, %v572
        %v599 = vmul.f32 %v439, %v574
        %v600 = vmul.f32 %v445, %v576
        %v601 = vmul.f32 %v451, %v578
        %v602 = vmul.f32 %v457, %v580
        %v603 = vmul.f32 %v463, %v582
        %v604 = vmul.f32 %v469, %v584
        %v605 = vmul.f32 %v475, %v586
        %v606 = vmul.f32 %v481, %v588
        %v607 = vmul.f32 %v487, %v590
        %v608 = vmul.f32 %v493, %v592
        %v609 = vmul.f32 %v593, %v405
        %v610 = vmul.f32 %v594, %v411
        %v611 = vmul.f32 %v595, %v417
        %v612 = vmul.f32 %v596, %v423
        %v613 = vmul.f32 %v597, %v429
        %v614 = vmul.f32 %v598, %v435
        %v615 = vmul.f32 %v599, %v441
        %v616 = vmul.f32 %v600, %v447
        %v617 = vmul.f32 %v601, %v453
        %v618 = vmul.f32 %v602, %v459
        %v619 = vmul.f32 %v603, %v465
        %v620 = vmul.f32 %v604, %v471
        %v621 = vmul.f32 %v605, %v477
        %v622 = vmul.f32 %v606, %v483
        %v623 = vmul.f32 %v607, %v489
        %v624 = vmul.f32 %v608, %v495
        %v625 = vld [vmem:[#allocation2] sm:$0xff]
        %v626 = vld [vmem:[#allocation2 + $0x8] sm:$0xff]
        %v627 = vld [vmem:[#allocation2 + $0x10] sm:$0xff]
        %v628 = vld [vmem:[#allocation2 + $0x18] sm:$0xff]
        %v629 = vld [vmem:[#allocation2 + $0x20] sm:$0xff]
        %v630 = vld [vmem:[#allocation2 + $0x28] sm:$0xff]
        %v631 = vld [vmem:[#allocation2 + $0x30] sm:$0xff]
        %v632 = vld [vmem:[#allocation2 + $0x38] sm:$0xff]
        %v633 = vld [vmem:[#allocation2 + $0x40] sm:$0xff]
        %v634 = vld [vmem:[#allocation2 + $0x48] sm:$0xff]
        %v635 = vld [vmem:[#allocation2 + $0x50] sm:$0xff]
        %v636 = vld [vmem:[#allocation2 + $0x58] sm:$0xff]
        %v637 = vld [vmem:[#allocation2 + $0x60] sm:$0xff]
        %v638 = vld [vmem:[#allocation2 + $0x68] sm:$0xff]
        %v639 = vld [vmem:[#allocation2 + $0x70] sm:$0xff]
        %v640 = vld [vmem:[#allocation2 + $0x78] sm:$0xff]
        %v641 = vld [vmem:[%s221] sm:$0xff]
        %v642 = vld [vmem:[%s221 + $0x8] sm:$0xff]
        %v643 = vld [vmem:[%s221 + $0x10] sm:$0xff]
        %v644 = vld [vmem:[%s221 + $0x18] sm:$0xff]
        %v645 = vld [vmem:[%s221 + $0x20] sm:$0xff]
        %v646 = vld [vmem:[%s221 + $0x28] sm:$0xff]
        %v647 = vld [vmem:[%s221 + $0x30] sm:$0xff]
        %v648 = vld [vmem:[%s221 + $0x38] sm:$0xff]
        %v649 = vld [vmem:[%s221 + $0x40] sm:$0xff]
        %v650 = vld [vmem:[%s221 + $0x48] sm:$0xff]
        %v651 = vld [vmem:[%s221 + $0x50] sm:$0xff]
        %v652 = vld [vmem:[%s221 + $0x58] sm:$0xff]
        %v653 = vld [vmem:[%s221 + $0x60] sm:$0xff]
        %v654 = vld [vmem:[%s221 + $0x68] sm:$0xff]
        %v655 = vld [vmem:[%s221 + $0x70] sm:$0xff]
        %v656 = vld [vmem:[%s221 + $0x78] sm:$0xff]
        %657 = vmatprep.subr.mxu0 0.0
        %658 = vmatpush1.msra.mxu0 %v656
        %659 = vmatprep.subr.mxu0 0.0
        %660 = vmatpush1.msra.mxu0 %v655
        %661 = vmatprep.subr.mxu0 0.0
        %662 = vmatpush1.msra.mxu0 %v654
        %663 = vmatprep.subr.mxu0 0.0
        %664 = vmatpush1.msra.mxu0 %v653
        %665 = vmatprep.subr.mxu0 0.0
        %666 = vmatpush1.msra.mxu0 %v652
        %667 = vmatprep.subr.mxu0 0.0
        %668 = vmatpush1.msra.mxu0 %v651
        %669 = vmatprep.subr.mxu0 0.0
        %670 = vmatpush1.msra.mxu0 %v650
        %671 = vmatprep.subr.mxu0 0.0
        %672 = vmatpush1.msra.mxu0 %v649
        %673 = vmatprep.subr.mxu0 0.0
        %674 = vmatpush1.msra.mxu0 %v648
        %675 = vmatprep.subr.mxu0 0.0
        %676 = vmatpush1.msra.mxu0 %v647
        %677 = vmatprep.subr.mxu0 0.0
        %678 = vmatpush1.msra.mxu0 %v646
        %679 = vmatprep.subr.mxu0 0.0
        %680 = vmatpush1.msra.mxu0 %v645
        %681 = vmatprep.subr.mxu0 0.0
        %682 = vmatpush1.msra.mxu0 %v644
        %683 = vmatprep.subr.mxu0 0.0
        %684 = vmatpush1.msra.mxu0 %v643
        %685 = vmatprep.subr.mxu0 0.0
        %686 = vmatpush1.msra.mxu0 %v642
        %687 = vmatprep.subr.mxu0 0.0
        %688 = vmatpush1.msra.mxu0 %v641
        %689 = vmatprep.subr.mxu0 0.0
        %690 = vmatpush2.msra.mxu0 0.0
        %691 = vmatprep.subr.mxu0 0.0
        %692 = vmatpush2.msra.mxu0 0.0
        %693 = vmatprep.subr.mxu0 0.0
        %694 = vmatpush2.msra.mxu0 0.0
        %695 = vmatprep.subr.mxu0 0.0
        %696 = vmatpush2.msra.mxu0 0.0
        %697 = vmatprep.subr.mxu0 0.0
        %698 = vmatpush2.msra.mxu0 0.0
        %699 = vmatprep.subr.mxu0 0.0
        %700 = vmatpush2.msra.mxu0 0.0
        %701 = vmatprep.subr.mxu0 0.0
        %702 = vmatpush2.msra.mxu0 0.0
        %703 = vmatprep.subr.mxu0 0.0
        %704 = vmatpush2.msra.mxu0 0.0
        %705 = vmatprep.subr.mxu0 0.0
        %706 = vmatpush2.msra.mxu0 0.0
        %707 = vmatprep.subr.mxu0 0.0
        %708 = vmatpush2.msra.mxu0 0.0
        %709 = vmatprep.subr.mxu0 0.0
        %710 = vmatpush2.msra.mxu0 0.0
        %711 = vmatprep.subr.mxu0 0.0
        %712 = vmatpush2.msra.mxu0 0.0
        %713 = vmatprep.subr.mxu0 0.0
        %714 = vmatpush2.msra.mxu0 0.0
        %715 = vmatprep.subr.mxu0 0.0
        %716 = vmatpush2.msra.mxu0 0.0
        %717 = vmatprep.subr.mxu0 0.0
        %718 = vmatpush2.msra.mxu0 0.0
        %719 = vmatprep.subr.mxu0 0.0
        %720 = vmatpush2.msra.mxu0 0.0
        %721 = vmatprep.mubr.f32.mxu0 0.0
        %722 = vmatmul.mubr.f32.gmra.mxu0 %v609
        %v723 = vpop.f32.mrf.mxu0
        %v724 = vadd.f32 0.0, %v723
        %v725 = vpop.f32.mrf.mxu0
        %726 = vmatprep.mubr.f32.mxu0 0.0
        %727 = vmatmul.mubr.f32.gmra.mxu0 %v610
        %v728 = vpop.f32.mrf.mxu0
        %v729 = vadd.f32 0.0, %v728
        %v730 = vpop.f32.mrf.mxu0
        %731 = vmatprep.mubr.f32.mxu0 0.0
        %732 = vmatmul.mubr.f32.gmra.mxu0 %v611
        %v733 = vpop.f32.mrf.mxu0
        %v734 = vadd.f32 0.0, %v733
        %v735 = vpop.f32.mrf.mxu0
        %736 = vmatprep.mubr.f32.mxu0 0.0
        %737 = vmatmul.mubr.f32.gmra.mxu0 %v612
        %v738 = vpop.f32.mrf.mxu0
        %v739 = vadd.f32 0.0, %v738
        %v740 = vpop.f32.mrf.mxu0
        %741 = vmatprep.mubr.f32.mxu0 0.0
        %742 = vmatmul.mubr.f32.gmra.mxu0 %v613
        %v743 = vpop.f32.mrf.mxu0
        %v744 = vadd.f32 0.0, %v743
        %v745 = vpop.f32.mrf.mxu0
        %746 = vmatprep.mubr.f32.mxu0 0.0
        %747 = vmatmul.mubr.f32.gmra.mxu0 %v614
        %v748 = vpop.f32.mrf.mxu0
        %v749 = vadd.f32 0.0, %v748
        %v750 = vpop.f32.mrf.mxu0
        %751 = vmatprep.mubr.f32.mxu0 0.0
        %752 = vmatmul.mubr.f32.gmra.mxu0 %v615
        %v753 = vpop.f32.mrf.mxu0
        %v754 = vadd.f32 0.0, %v753
        %v755 = vpop.f32.mrf.mxu0
        %756 = vmatprep.mubr.f32.mxu0 0.0
        %757 = vmatmul.mubr.f32.gmra.mxu0 %v616
        %v758 = vpop.f32.mrf.mxu0
        %v759 = vadd.f32 0.0, %v758
        %v760 = vpop.f32.mrf.mxu0
        %761 = vmatprep.mubr.f32.mxu0 0.0
        %762 = vmatmul.mubr.f32.gmra.mxu0 %v617
        %v763 = vpop.f32.mrf.mxu0
        %v764 = vadd.f32 0.0, %v763
        %v765 = vpop.f32.mrf.mxu0
        %766 = vmatprep.mubr.f32.mxu0 0.0
        %767 = vmatmul.mubr.f32.gmra.mxu0 %v618
        %v768 = vpop.f32.mrf.mxu0
        %v769 = vadd.f32 0.0, %v768
        %v770 = vpop.f32.mrf.mxu0
        %771 = vmatprep.mubr.f32.mxu0 0.0
        %772 = vmatmul.mubr.f32.gmra.mxu0 %v619
        %v773 = vpop.f32.mrf.mxu0
        %v774 = vadd.f32 0.0, %v773
        %v775 = vpop.f32.mrf.mxu0
        %776 = vmatprep.mubr.f32.mxu0 0.0
        %777 = vmatmul.mubr.f32.gmra.mxu0 %v620
        %v778 = vpop.f32.mrf.mxu0
        %v779 = vadd.f32 0.0, %v778
        %v780 = vpop.f32.mrf.mxu0
        %781 = vmatprep.mubr.f32.mxu0 0.0
        %782 = vmatmul.mubr.f32.gmra.mxu0 %v621
        %v783 = vpop.f32.mrf.mxu0
        %v784 = vadd.f32 0.0, %v783
        %v785 = vpop.f32.mrf.mxu0
        %786 = vmatprep.mubr.f32.mxu0 0.0
        %787 = vmatmul.mubr.f32.gmra.mxu0 %v622
        %v788 = vpop.f32.mrf.mxu0
        %v789 = vadd.f32 0.0, %v788
        %v790 = vpop.f32.mrf.mxu0
        %791 = vmatprep.mubr.f32.mxu0 0.0
        %792 = vmatmul.mubr.f32.gmra.mxu0 %v623
        %v793 = vpop.f32.mrf.mxu0
        %v794 = vadd.f32 0.0, %v793
        %v795 = vpop.f32.mrf.mxu0
        %796 = vmatprep.mubr.f32.mxu0 0.0
        %797 = vmatmul.mubr.f32.gmra.mxu0 %v624
        %v798 = vpop.f32.mrf.mxu0
        %v799 = vadd.f32 0.0, %v798
        %v800 = vpop.f32.mrf.mxu0
        %801 = vdwg.mxu0
        %v802 = vadd.f32 %v625, %v724
        %v803 = vadd.f32 %v626, %v729
        %v804 = vadd.f32 %v627, %v734
        %v805 = vadd.f32 %v628, %v739
        %v806 = vadd.f32 %v629, %v744
        %v807 = vadd.f32 %v630, %v749
        %v808 = vadd.f32 %v631, %v754
        %v809 = vadd.f32 %v632, %v759
        %v810 = vadd.f32 %v633, %v764
        %v811 = vadd.f32 %v634, %v769
        %v812 = vadd.f32 %v635, %v774
        %v813 = vadd.f32 %v636, %v779
        %v814 = vadd.f32 %v637, %v784
        %v815 = vadd.f32 %v638, %v789
        %v816 = vadd.f32 %v639, %v794
        %v817 = vadd.f32 %v640, %v799
        %818 = vst [vmem:[#allocation2] sm:$0xff] %v802
        %819 = vst [vmem:[#allocation2 + $0x8] sm:$0xff] %v803
        %820 = vst [vmem:[#allocation2 + $0x10] sm:$0xff] %v804
        %821 = vst [vmem:[#allocation2 + $0x18] sm:$0xff] %v805
        %822 = vst [vmem:[#allocation2 + $0x20] sm:$0xff] %v806
        %823 = vst [vmem:[#allocation2 + $0x28] sm:$0xff] %v807
        %824 = vst [vmem:[#allocation2 + $0x30] sm:$0xff] %v808
        %825 = vst [vmem:[#allocation2 + $0x38] sm:$0xff] %v809
        %826 = vst [vmem:[#allocation2 + $0x40] sm:$0xff] %v810
        %827 = vst [vmem:[#allocation2 + $0x48] sm:$0xff] %v811
        %828 = vst [vmem:[#allocation2 + $0x50] sm:$0xff] %v812
        %829 = vst [vmem:[#allocation2 + $0x58] sm:$0xff] %v813
        %830 = vst [vmem:[#allocation2 + $0x60] sm:$0xff] %v814
        %831 = vst [vmem:[#allocation2 + $0x68] sm:$0xff] %v815
        %832 = vst [vmem:[#allocation2 + $0x70] sm:$0xff] %v816
        %833 = vst [vmem:[#allocation2 + $0x78] sm:$0xff] %v817
        %p834 = scmp.eq.s32.totalorder %s25, 1
        // Predicated region
        $region45: #{_vision_expert_mlp_2d.1} parent=31 // pred_check
          %p835 = pneg %p834
        $region46: #{_vision_expert_mlp_2d.1} parent=31 // pred_check_branch
          %837 = sbr.rel (%p835) target = $region48
        $region47: #{_vision_expert_mlp_2d.1} parent=31 // pred_region
          %v838 = vld [vmem:[#allocation2] sm:$0xff]
          %v839 = vld [vmem:[#allocation2 + $0x8] sm:$0xff]
          %v840 = vld [vmem:[#allocation2 + $0x10] sm:$0xff]
          %v841 = vld [vmem:[#allocation2 + $0x18] sm:$0xff]
          %v842 = vld [vmem:[#allocation2 + $0x20] sm:$0xff]
          %v843 = vld [vmem:[#allocation2 + $0x28] sm:$0xff]
          %v844 = vld [vmem:[#allocation2 + $0x30] sm:$0xff]
          %v845 = vld [vmem:[#allocation2 + $0x38] sm:$0xff]
          %v846 = vld [vmem:[#allocation2 + $0x40] sm:$0xff]
          %v847 = vld [vmem:[#allocation2 + $0x48] sm:$0xff]
          %v848 = vld [vmem:[#allocation2 + $0x50] sm:$0xff]
          %v849 = vld [vmem:[#allocation2 + $0x58] sm:$0xff]
          %v850 = vld [vmem:[#allocation2 + $0x60] sm:$0xff]
          %v851 = vld [vmem:[#allocation2 + $0x68] sm:$0xff]
          %v852 = vld [vmem:[#allocation2 + $0x70] sm:$0xff]
          %v853 = vld [vmem:[#allocation2 + $0x78] sm:$0xff]
          %854 = vst [vmem:[%s266] sm:$0xff] %v838
          %855 = vst [vmem:[%s266 + $0x8] sm:$0xff] %v839
          %856 = vst [vmem:[%s266 + $0x10] sm:$0xff] %v840
          %857 = vst [vmem:[%s266 + $0x18] sm:$0xff] %v841
          %858 = vst [vmem:[%s266 + $0x20] sm:$0xff] %v842
          %859 = vst [vmem:[%s266 + $0x28] sm:$0xff] %v843
          %860 = vst [vmem:[%s266 + $0x30] sm:$0xff] %v844
          %861 = vst [vmem:[%s266 + $0x38] sm:$0xff] %v845
          %862 = vst [vmem:[%s266 + $0x40] sm:$0xff] %v846
          %863 = vst [vmem:[%s266 + $0x48] sm:$0xff] %v847
          %864 = vst [vmem:[%s266 + $0x50] sm:$0xff] %v848
          %865 = vst [vmem:[%s266 + $0x58] sm:$0xff] %v849
          %866 = vst [vmem:[%s266 + $0x60] sm:$0xff] %v850
          %867 = vst [vmem:[%s266 + $0x68] sm:$0xff] %v851
          %868 = vst [vmem:[%s266 + $0x70] sm:$0xff] %v852
          %869 = vst [vmem:[%s266 + $0x78] sm:$0xff] %v853
        $region48: #{_vision_expert_mlp_2d.1} parent=31 // pred_fallthru
          _
        %s870 = smul.u32 16, %s24
        %p871 = scmp.lt.s32.totalorder %s870, 15
        %s872 = scalar_select %p871, %s870, 15
        %s873 = smul.addr %s872, 8
        %s874 = scalar_lea.vmem %s3, %s873
        // Predicated region
        $region49: #{_vision_expert_mlp_2d.1} parent=31 // pred_check
          %p875 = pneg %p128
        $region50: #{_vision_expert_mlp_2d.1} parent=31 // pred_check_branch
          %877 = sbr.rel (%p875) target = $region52
        $region51: #{_vision_expert_mlp_2d.1} parent=31 // pred_region
          %s878 = smul.u32 16, %s24
        $region52: #{_vision_expert_mlp_2d.1} parent=31 // pred_fallthru
          _
        // Predicated region
        $region53: #{_vision_expert_mlp_2d.1} parent=31 // pred_check
          %p879 = pneg %p128
        $region54: #{_vision_expert_mlp_2d.1} parent=31 // pred_check_branch
          %881 = sbr.rel (%p879) target = $region56
        $region55: #{_vision_expert_mlp_2d.1} parent=31 // pred_region
          %s882 = smul.u32 16, %s24
          %p883 = scmp.lt.s32.totalorder %s882, 15
          %s884 = scalar_select %p883, %s882, 15
          %s885 = smul.addr %s884, 8
          %s886 = scalar_lea.vmem %s3, %s885
        $region56: #{_vision_expert_mlp_2d.1} parent=31 // pred_fallthru
          _
      $region32: #{_vision_expert_mlp_2d.1} parent=5 // pred_fallthru
        _
      %p887 = scmp.le.s32.totalorder 2, %s15
      // Predicated region
      $region57: #{_vision_expert_mlp_2d.1} parent=5 // pred_check
        %p888 = pneg %p887
      $region58: #{_vision_expert_mlp_2d.1} parent=5 // pred_check_branch
        %890 = sbr.rel (%p888) target = $region60
      $region59: #{_vision_expert_mlp_2d.1} parent=5 // pred_region
        %s891 = ssub.s32 %s15, 2
      $region60: #{_vision_expert_mlp_2d.1} parent=5 // pred_fallthru
        _
    $region6: #{_vision_expert_mlp_2d.1} parent=1 // loop_footer
      %s19 = sadd.s32 1, %s15
    $region7: #{_vision_expert_mlp_2d.1} parent=1 // loop_footer_branch
      %14 = sbr.rel target = $region3
    $region8: #{_vision_expert_mlp_2d.1} parent=1 // loop_exit
      _
    %892 = vsyncpa [#allocation4], 1
    %s893 = scalar_lea.sflag [#allocation4], 1
    %894 = vsyncpa %s893, 1
    %895 = vsyncpa [#allocation6], 1
    %s896 = scalar_lea.sflag [#allocation6], 1
    %897 = vsyncpa %s896, 1

</llo_original>
